<compile_context>
chip_gen: v7x
topology: tpu7x:2x2x1
jax: 0.10.0
libtpu: 0.0.40
codegen_flags: <defaults>
</compile_context>

<pallas_src>
import functools

import numpy as np
import jax
import jax.numpy as jnp
from jax.experimental import pallas as pl
from jax.experimental.pallas import tpu as pltpu


# ------------------------------- Pallas kernel --------------------------------
def multiplier_update_kernel(d_ref, q_ref, z_ref, beta_ref, out_ref, acc_ref, *,
                             eta):
    """One (tm, ncol) output tile; k-axis of the grid is the contraction."""
    k = pl.program_id(1)

    @pl.when(k == 0)
    def _init():
        acc_ref[...] = jnp.zeros_like(acc_ref)

    # MXU matmul, f32 accumulate.
    acc_ref[...] += jnp.dot(d_ref[...], q_ref[...],
                            preferred_element_type=jnp.float32)

    @pl.when(k == pl.num_programs(1) - 1)
    def _finalize():
        # Beta_l + eta * (D_l @ Q - Z_l)   (pure VPU epilogue, lane-dense store)
        out_ref[...] = (beta_ref[...]
                        + eta * (acc_ref[...] - z_ref[...])).astype(out_ref.dtype)


# --------------------------------- wrapper ------------------------------------
def multiplier_update(Q, D_l, Z_l, Beta_l, *, eta, tm=128, tk=128):
    """Beta_l + eta * (D_l @ Q - Z_l).

    D_l:    (M, K)
    Q:      (K, NCOL)
    Z_l:    (M, NCOL)
    Beta_l: (M, NCOL)
    returns (M, NCOL)
    """
    M, K = D_l.shape
    K2, NCOL = Q.shape
    assert K == K2 and Z_l.shape == (M, NCOL) and Beta_l.shape == (M, NCOL)
    assert M % tm == 0 and K % tk == 0, "demo shapes chosen tile-aligned"

    kernel = functools.partial(multiplier_update_kernel, eta=eta)

    return pl.pallas_call(
        kernel,
        out_shape=jax.ShapeDtypeStruct((M, NCOL), Beta_l.dtype),
        grid_spec=pltpu.PrefetchScalarGridSpec(
            num_scalar_prefetch=0,
            grid=(M // tm, K // tk),
            in_specs=[
                pl.BlockSpec((tm, tk), lambda i, k: (i, k)),     # D_l tile
                pl.BlockSpec((tk, NCOL), lambda i, k: (k, 0)),   # Q tile
                pl.BlockSpec((tm, NCOL), lambda i, k: (i, 0)),   # Z_l tile
                pl.BlockSpec((tm, NCOL), lambda i, k: (i, 0)),   # Beta_l tile
            ],
            out_specs=pl.BlockSpec((tm, NCOL), lambda i, k: (i, 0)),
            scratch_shapes=[pltpu.VMEM((tm, NCOL), jnp.float32)],
        ),
        compiler_params=pltpu.CompilerParams(
            dimension_semantics=("parallel", "arbitrary")),
    )(D_l, Q, Z_l, Beta_l)


# --------------------------- pure-JAX reference --------------------------------
def multiplier_update_ref(Q, D_l, Z_l, Beta_l, *, eta):
    return Beta_l + eta * (D_l @ Q - Z_l)


if __name__ == "__main__":
    # Small, module-consistent shapes (ADMM-style: D_l maps a K-dim flattened
    # flow to an M-dim gradient space, Q stacks NCOL flow columns).
    M, K, NCOL = 256, 256, 128
    ETA = 0.5

    key = jax.random.PRNGKey(0)
    k1, k2, k3, k4 = jax.random.split(key, 4)
    D_l = jax.random.normal(k1, (M, K), dtype=jnp.float32)
    Q = jax.random.normal(k2, (K, NCOL), dtype=jnp.float32)
    Z_l = jax.random.normal(k3, (M, NCOL), dtype=jnp.float32)
    Beta_l = jax.random.normal(k4, (M, NCOL), dtype=jnp.float32)

    fn = jax.jit(functools.partial(multiplier_update, eta=ETA))
    Beta_new = jax.block_until_ready(fn(Q, D_l, Z_l, Beta_l))

    Beta_ref = multiplier_update_ref(Q, D_l, Z_l, Beta_l, eta=ETA)
    assert Beta_new.shape == (M, NCOL)
    np.testing.assert_allclose(np.asarray(Beta_new), np.asarray(Beta_ref),
                               rtol=1e-5, atol=1e-5)

    print("KERNEL_OK")
</pallas_src>

<mosaic_0001>
module attributes {stable_mosaic.version = 11 : i64} {
  func.func @multiplier_update_kernel(%arg0: i32, %arg1: i32, %arg2: memref<128x128xf32, #tpu.memory_space<vmem>>, %arg3: memref<128x128xf32, #tpu.memory_space<vmem>>, %arg4: memref<128x128xf32, #tpu.memory_space<vmem>>, %arg5: memref<128x128xf32, #tpu.memory_space<vmem>>, %arg6: memref<128x128xf32, #tpu.memory_space<vmem>>, %arg7: memref<128x128xf32, #tpu.memory_space<vmem>>) attributes {dimension_semantics = [#tpu.dimension_semantics<parallel>, #tpu.dimension_semantics<arbitrary>], iteration_bounds = array<i64: 2, 2>, scalar_prefetch = 0 : i64, scratch_operands = 1 : i64, tpu.core_type = #tpu.core_type<tc>, window_params = [{transform_indices = @transform_0, window_bounds = array<i64: 128, 128>}, {transform_indices = @transform_1, window_bounds = array<i64: 128, 128>}, {transform_indices = @transform_2, window_bounds = array<i64: 128, 128>}, {transform_indices = @transform_3, window_bounds = array<i64: 128, 128>}, {transform_indices = @transform_4, window_bounds = array<i64: 128, 128>}]} {
    %c0_i32 = arith.constant 0 : i32
    %0 = arith.cmpi eq, %arg1, %c0_i32 : i32
    %1 = arith.extui %0 : i1 to i32
    %c0_i32_0 = arith.constant 0 : i32
    %2 = arith.cmpi ne, %1, %c0_i32_0 : i32
    scf.if %2 {
      %cst_9 = arith.constant 0.000000e+00 : f32
      %12 = vector.broadcast %cst_9 : f32 to vector<128x128xf32>
      %c0_10 = arith.constant 0 : index
      %c0_11 = arith.constant 0 : index
      %13 = vector.load %arg7[%c0_10, %c0_11] : memref<128x128xf32, #tpu.memory_space<vmem>>, vector<128x128xf32>
      tpu.vector_store %arg7[%c0_10, %c0_11], %12 {strides = array<i32>} : memref<128x128xf32, #tpu.memory_space<vmem>>, vector<128x128xf32>,
    } else {
    }
    %c0 = arith.constant 0 : index
    %c0_1 = arith.constant 0 : index
    %3 = vector.load %arg7[%c0, %c0_1] : memref<128x128xf32, #tpu.memory_space<vmem>>, vector<128x128xf32>
    %c0_2 = arith.constant 0 : index
    %c0_3 = arith.constant 0 : index
    %4 = vector.load %arg2[%c0_2, %c0_3] : memref<128x128xf32, #tpu.memory_space<vmem>>, vector<128x128xf32>
    %c0_4 = arith.constant 0 : index
    %c0_5 = arith.constant 0 : index
    %5 = vector.load %arg3[%c0_4, %c0_5] : memref<128x128xf32, #tpu.memory_space<vmem>>, vector<128x128xf32>
    %cst = arith.constant dense<0.000000e+00> : vector<128x128xf32>
    %6 = tpu.matmul %4, %5, %cst {dimension_numbers = #tpu.dot_dimension_numbers<[1], [0], [0], [1], [0, 0, 1, 1], [], []>} : vector<128x128xf32>, vector<128x128xf32>, vector<128x128xf32> -> vector<128x128xf32>
    %7 = arith.addf %3, %6 : vector<128x128xf32>
    %c0_6 = arith.constant 0 : index
    %c0_7 = arith.constant 0 : index
    %8 = vector.load %arg7[%c0_6, %c0_7] : memref<128x128xf32, #tpu.memory_space<vmem>>, vector<128x128xf32>
    tpu.vector_store %arg7[%c0_6, %c0_7], %7 {strides = array<i32>} : memref<128x128xf32, #tpu.memory_space<vmem>>, vector<128x128xf32>,
    %c1_i32 = arith.constant 1 : i32
    %9 = arith.cmpi eq, %arg1, %c1_i32 : i32
    %10 = arith.extui %9 : i1 to i32
    %c0_i32_8 = arith.constant 0 : i32
    %11 = arith.cmpi ne, %10, %c0_i32_8 : i32
    scf.if %11 {
      %c0_9 = arith.constant 0 : index
      %c0_10 = arith.constant 0 : index
      %12 = vector.load %arg5[%c0_9, %c0_10] : memref<128x128xf32, #tpu.memory_space<vmem>>, vector<128x128xf32>
      %c0_11 = arith.constant 0 : index
      %c0_12 = arith.constant 0 : index
      %13 = vector.load %arg7[%c0_11, %c0_12] : memref<128x128xf32, #tpu.memory_space<vmem>>, vector<128x128xf32>
      %c0_13 = arith.constant 0 : index
      %c0_14 = arith.constant 0 : index
      %14 = vector.load %arg4[%c0_13, %c0_14] : memref<128x128xf32, #tpu.memory_space<vmem>>, vector<128x128xf32>
      %15 = arith.subf %13, %14 : vector<128x128xf32>
      %cst_15 = arith.constant 5.000000e-01 : f32
      %16 = vector.broadcast %cst_15 : f32 to vector<128x128xf32>
      %17 = arith.mulf %16, %15 : vector<128x128xf32>
      %18 = arith.addf %12, %17 : vector<128x128xf32>
      %c0_16 = arith.constant 0 : index
      %c0_17 = arith.constant 0 : index
      %19 = vector.load %arg6[%c0_16, %c0_17] : memref<128x128xf32, #tpu.memory_space<vmem>>, vector<128x128xf32>
      tpu.vector_store %arg6[%c0_16, %c0_17], %18 {strides = array<i32>} : memref<128x128xf32, #tpu.memory_space<vmem>>, vector<128x128xf32>,
    } else {
    }
    return
  }
  func.func @transform_0(%arg0: i32, %arg1: i32) -> (i32, i32) {
    %c0_i32 = arith.constant 0 : i32
    return %arg0, %arg1 : i32, i32
  }
  func.func @transform_1(%arg0: i32, %arg1: i32) -> (i32, i32) {
    %c0_i32 = arith.constant 0 : i32
    %c0_i32_0 = arith.constant 0 : i32
    return %arg1, %c0_i32 : i32, i32
  }
  func.func @transform_2(%arg0: i32, %arg1: i32) -> (i32, i32) {
    %c0_i32 = arith.constant 0 : i32
    %c0_i32_0 = arith.constant 0 : i32
    return %arg0, %c0_i32 : i32, i32
  }
  func.func @transform_3(%arg0: i32, %arg1: i32) -> (i32, i32) {
    %c0_i32 = arith.constant 0 : i32
    %c0_i32_0 = arith.constant 0 : i32
    return %arg0, %c0_i32 : i32, i32
  }
  func.func @transform_4(%arg0: i32, %arg1: i32) -> (i32, i32) {
    %c0_i32 = arith.constant 0 : i32
    %c0_i32_0 = arith.constant 0 : i32
    return %arg0, %c0_i32 : i32, i32
  }
}

</mosaic_0001>

<llo_original>
// kernel: multiplier_update.1
$region0: #{multiplier_update.1}
  #allocation0 [shape = 'u32[]', space=smem, size = 0x4, offset = 0x4, fixed_abs, tag = 'smem constant byte address 0x4 - core index']
  #allocation1 [shape = 'u32[144,128]{1,0:T(1,128)}', space=vmem, size = 0x12000, scoped, tag = 'internal scratch']
  #allocation2 [shape = 'f32[128,128]{1,0:T(8,128)}', space=vmem, size = 0x10000, scoped, tag = 'scratch operand']
  %s0 = inlined_call_operand.hbm [shape: f32[256,256], index: 0, kind: input, shape index: {}]
  %s1 = inlined_call_operand.hbm [shape: f32[256,128], index: 1, kind: input, shape index: {}]
  %s2 = inlined_call_operand.hbm [shape: f32[256,128], index: 2, kind: input, shape index: {}]
  %s3 = inlined_call_operand.hbm [shape: f32[256,128], index: 3, kind: input, shape index: {}]
  %s4 = inlined_call_operand.hbm [shape: f32[256,128], index: 4, kind: output, shape index: {}]
  %s5 = sld [smem:[#allocation0]]
  $region73: #{multiplier_update.1} parent=0
    _
  %s7 = ssub.s32 1, %s5
  %s8 = scalar_select 0, %s7, %s5
  $region1: #{multiplier_update.1} parent=0
    #allocation3 [shape = 'u8[131072]{0}', space=vmem, size = 0x20000, scoped, tag = 'input window, operand 0']
    #allocation4 [shape = 's32[2]{0}', space=sflag, size = 0x8, scoped, tag = 'scoped memory for multiplier_update.1']
    #allocation5 [shape = 's32[2]{0}', space=sflag, size = 0x8, scoped, tag = 'scoped memory for multiplier_update.1']
    #allocation6 [shape = 'u8[131072]{0}', space=vmem, size = 0x20000, scoped, tag = 'input window, operand 1']
    #allocation7 [shape = 's32[2]{0}', space=sflag, size = 0x8, scoped, tag = 'scoped memory for multiplier_update.1']
    #allocation8 [shape = 'u8[131072]{0}', space=vmem, size = 0x20000, scoped, tag = 'input window, operand 2']
    #allocation9 [shape = 'u8[131072]{0}', space=vmem, size = 0x20000, scoped, tag = 'input window, operand 3']
    #allocation10 [shape = 's32[2]{0}', space=sflag, size = 0x8, scoped, tag = 'scoped memory for multiplier_update.1']
    #allocation11 [shape = 'u8[131072]{0}', space=vmem, size = 0x20000, scoped, tag = 'output window, operand 0']
    %9 = vsyncpa [#allocation4], 0
    %s10 = scalar_lea.sflag [#allocation4], 1
    %11 = vsyncpa %s10, 0
    %12 = vsyncpa [#allocation7], 0
    %s13 = scalar_lea.sflag [#allocation7], 1
    %14 = vsyncpa %s13, 0
    %15 = vsyncpa [#allocation10], 0
    %s16 = scalar_lea.sflag [#allocation10], 1
    %17 = vsyncpa %s16, 0
    %18 = vsyncpa [#allocation5], 0
    %s19 = scalar_lea.sflag [#allocation5], 1
    %20 = vsyncpa %s19, 0
    loop: start=0, step=1, limit=6
    $region2: #{multiplier_update.1} parent=1 // loop_pre_header
      _
    $region3: #{multiplier_update.1} parent=1 // loop_header
      %s22 = sphi 0, %s26
      %p23 = scmp.ge.s32.totalorder %s22, 6
      %s29 = sphi 0, %s41
      %s30 = sphi 0, %s37
      %s31 = sphi 0, %s29
      %s32 = sphi 0, %s30
      %s33 = sphi 0, %s31
      %s34 = sphi 0, %s32
      %s46 = sphi 0, %s48
      %s49 = sphi 0, %s46
      %s50 = sphi 0, %s49
      %s66 = sphi 0, %s50
      %s72 = sphi 0, %s74
      %s75 = sphi 0, %s72
      %s76 = sphi 0, %s75
      %s92 = sphi 0, %s76
      %s98 = sphi 0, %s100
      %s101 = sphi 0, %s98
      %s102 = sphi 0, %s101
      %s118 = sphi 0, %s102
      %s124 = sphi 0, %s126
      %s127 = sphi 0, %s124
      %s128 = sphi 0, %s127
      %s144 = sphi 0, %s128
      %s150 = sphi 0, %s152
      %s153 = sphi 0, %s150
      %s154 = sphi 0, %s153
      %s170 = sphi 0, %s154
    $region4: #{multiplier_update.1} parent=1 // loop_header_branch
      %25 = sbr.rel (%p23) target = $region8
    $region5: #{multiplier_update.1} parent=1 // loop_body
      %s27 = ssub.s32 %s22, 1
      %s28 = ssub.s32 %s22, 2
      %s35 = sadd.s32 1, %s30
      %p36 = scmp.ge.s32.totalorder %s35, 2
      %s37 = scalar_select %p36, 0, %s35
      %s38 = sadd.s32 1, %s29
      %s39 = scalar_select %p36, %s38, %s29
      %p40 = scmp.ge.s32.totalorder %s39, 2
      %s41 = scalar_select %p40, 0, %s39
      %s42 = ssub.s32 %s29, %s41
      %s43 = ssub.s32 %s30, %s37
      %s44 = sor.u32 %s42, %s43
      %p45 = scmp.eq.s32.totalorder %s44, 0
      %s47 = sadd.s32 %s46, 1
      %s48 = scalar_select %p45, %s46, %s47
      %p51 = pneg %p45
      %p52 = scmp.eq.s32.totalorder %s22, 3
      %p53 = por %p51, %p52
      %p54 = scmp.ne.s32.totalorder %s46, %s49
      %p55 = scmp.eq.s32.totalorder %s22, 0
      %p56 = por %p54, %p55
      %p57 = scmp.ne.s32.totalorder %s46, %s49
      %p58 = scmp.eq.s32.totalorder %s27, 3
      %p59 = por %p57, %p58
      %p60 = scmp.ne.s32.totalorder %s49, %s50
      %p61 = scmp.eq.s32.totalorder %s27, 0
      %p62 = por %p60, %p61
      %p63 = scmp.ne.s32.totalorder %s49, %s50
      %p64 = scmp.eq.s32.totalorder %s28, 3
      %p65 = por %p63, %p64
      %p67 = scmp.ne.s32.totalorder %s50, %s66
      %p68 = scmp.eq.s32.totalorder %s28, 0
      %p69 = por %p67, %p68
      %s70 = ssub.s32 %s30, %s37
      %p71 = scmp.eq.s32.totalorder %s70, 0
      %s73 = sadd.s32 %s72, 1
      %s74 = scalar_select %p71, %s72, %s73
      %p77 = pneg %p71
      %p78 = scmp.eq.s32.totalorder %s22, 3
      %p79 = por %p77, %p78
      %p80 = scmp.ne.s32.totalorder %s72, %s75
      %p81 = scmp.eq.s32.totalorder %s22, 0
      %p82 = por %p80, %p81
      %p83 = scmp.ne.s32.totalorder %s72, %s75
      %p84 = scmp.eq.s32.totalorder %s27, 3
      %p85 = por %p83, %p84
      %p86 = scmp.ne.s32.totalorder %s75, %s76
      %p87 = scmp.eq.s32.totalorder %s27, 0
      %p88 = por %p86, %p87
      %p89 = scmp.ne.s32.totalorder %s75, %s76
      %p90 = scmp.eq.s32.totalorder %s28, 3
      %p91 = por %p89, %p90
      %p93 = scmp.ne.s32.totalorder %s76, %s92
      %p94 = scmp.eq.s32.totalorder %s28, 0
      %p95 = por %p93, %p94
      %s96 = ssub.s32 %s29, %s41
      %p97 = scmp.eq.s32.totalorder %s96, 0
      %s99 = sadd.s32 %s98, 1
      %s100 = scalar_select %p97, %s98, %s99
      %p103 = pneg %p97
      %p104 = scmp.eq.s32.totalorder %s22, 3
      %p105 = por %p103, %p104
      %p106 = scmp.ne.s32.totalorder %s98, %s101
      %p107 = scmp.eq.s32.totalorder %s22, 0
      %p108 = por %p106, %p107
      %p109 = scmp.ne.s32.totalorder %s98, %s101
      %p110 = scmp.eq.s32.totalorder %s27, 3
      %p111 = por %p109, %p110
      %p112 = scmp.ne.s32.totalorder %s101, %s102
      %p113 = scmp.eq.s32.totalorder %s27, 0
      %p114 = por %p112, %p113
      %p115 = scmp.ne.s32.totalorder %s101, %s102
      %p116 = scmp.eq.s32.totalorder %s28, 3
      %p117 = por %p115, %p116
      %p119 = scmp.ne.s32.totalorder %s102, %s118
      %p120 = scmp.eq.s32.totalorder %s28, 0
      %p121 = por %p119, %p120
      %s122 = ssub.s32 %s29, %s41
      %p123 = scmp.eq.s32.totalorder %s122, 0
      %s125 = sadd.s32 %s124, 1
      %s126 = scalar_select %p123, %s124, %s125
      %p129 = pneg %p123
      %p130 = scmp.eq.s32.totalorder %s22, 3
      %p131 = por %p129, %p130
      %p132 = scmp.ne.s32.totalorder %s124, %s127
      %p133 = scmp.eq.s32.totalorder %s22, 0
      %p134 = por %p132, %p133
      %p135 = scmp.ne.s32.totalorder %s124, %s127
      %p136 = scmp.eq.s32.totalorder %s27, 3
      %p137 = por %p135, %p136
      %p138 = scmp.ne.s32.totalorder %s127, %s128
      %p139 = scmp.eq.s32.totalorder %s27, 0
      %p140 = por %p138, %p139
      %p141 = scmp.ne.s32.totalorder %s127, %s128
      %p142 = scmp.eq.s32.totalorder %s28, 3
      %p143 = por %p141, %p142
      %p145 = scmp.ne.s32.totalorder %s128, %s144
      %p146 = scmp.eq.s32.totalorder %s28, 0
      %p147 = por %p145, %p146
      %s148 = ssub.s32 %s29, %s41
      %p149 = scmp.eq.s32.totalorder %s148, 0
      %s151 = sadd.s32 %s150, 1
      %s152 = scalar_select %p149, %s150, %s151
      %p155 = pneg %p149
      %p156 = scmp.eq.s32.totalorder %s22, 3
      %p157 = por %p155, %p156
      %p158 = scmp.ne.s32.totalorder %s150, %s153
      %p159 = scmp.eq.s32.totalorder %s22, 0
      %p160 = por %p158, %p159
      %p161 = scmp.ne.s32.totalorder %s150, %s153
      %p162 = scmp.eq.s32.totalorder %s27, 3
      %p163 = por %p161, %p162
      %p164 = scmp.ne.s32.totalorder %s153, %s154
      %p165 = scmp.eq.s32.totalorder %s27, 0
      %p166 = por %p164, %p165
      %p167 = scmp.ne.s32.totalorder %s153, %s154
      %p168 = scmp.eq.s32.totalorder %s28, 3
      %p169 = por %p167, %p168
      %p171 = scmp.ne.s32.totalorder %s154, %s170
      %p172 = scmp.eq.s32.totalorder %s28, 0
      %p173 = por %p171, %p172
      %p174 = scmp.le.s32.totalorder 1, %s22
      %p175 = scmp.lt.s32.totalorder %s22, 5
      %p176 = pnand %p174, %p175
      %p177 = pneg %p176
      // Predicated region
      $region9: #{multiplier_update.1} parent=5 // pred_check
        _
      $region10: #{multiplier_update.1} parent=5 // pred_check_branch
        %179 = sbr.rel (%p176) target = $region12
      $region11: #{multiplier_update.1} parent=5 // pred_region
        %s180 = ssub.s32 %s22, 1
      $region12: #{multiplier_update.1} parent=5 // pred_fallthru
        _
      %p181 = scmp.lt.s32.totalorder %s22, 4
      // Predicated region
      $region13: #{multiplier_update.1} parent=5 // pred_check
        %p182 = pneg %p181
      $region14: #{multiplier_update.1} parent=5 // pred_check_branch
        %184 = sbr.rel (%p182) target = $region16
      $region15: #{multiplier_update.1} parent=5 // pred_region
        // Predicated region
        $region17: #{multiplier_update.1} parent=15 // pred_check
          %p185 = pneg %p56
        $region18: #{multiplier_update.1} parent=15 // pred_check_branch
          %187 = sbr.rel (%p185) target = $region20
        $region19: #{multiplier_update.1} parent=15 // pred_region
          %s188 = sand.u32 %s46, 1
          %s189 = scalar_lea.sflag [#allocation4], %s188
          %s190 = sand.u32 %s46, 1
          %s191 = smul.addr %s190, 128
          %s192 = scalar_lea.vmem [#allocation3], %s191
          %s193 = smul.u32 16, %s29
          %s195 = ssub.s32 2048, 2048
          %196 = vsyncadd %s189, %s195
          %s197 = smul.addr %s193, 2
          %s198 = sadd.s32 %s30, %s197
          %s199 = smul.addr %s198, 128
          %s200 = scalar_lea.hbm %s0, %s199
          %s201 = sshll.u32 %s192, 4
          %s202 = int_to_ptr.vmem [resolvable:$true] %s201
          %207 = dma.hbm_to_vmem [thread:$0]  %s200, 2048, %s202, %s189, 256, 128, 8
        $region20: #{multiplier_update.1} parent=15 // pred_fallthru
          _
        // Predicated region
        $region21: #{multiplier_update.1} parent=15 // pred_check
          %p208 = pneg %p82
        $region22: #{multiplier_update.1} parent=15 // pred_check_branch
          %210 = sbr.rel (%p208) target = $region24
        $region23: #{multiplier_update.1} parent=15 // pred_region
          %s211 = sand.u32 %s22, 1
          %s212 = scalar_lea.sflag [#allocation7], %s211
          %s213 = sand.u32 %s72, 1
          %s214 = smul.addr %s213, 128
          %s215 = scalar_lea.vmem [#allocation6], %s214
          %s216 = smul.u32 16, %s30
          %s218 = ssub.s32 2048, 2048
          %219 = vsyncadd %s212, %s218
          %s220 = smul.addr %s216, 128
          %s221 = scalar_lea.hbm %s1, %s220
          %s222 = sshll.u32 %s215, 4
          %s223 = int_to_ptr.vmem [resolvable:$true] %s222
          %228 = dma.hbm_to_vmem [thread:$0]  %s221, 2048, %s223, %s212, 128, 128, 8
        $region24: #{multiplier_update.1} parent=15 // pred_fallthru
          _
        // Predicated region
        $region25: #{multiplier_update.1} parent=15 // pred_check
          %p229 = pneg %p108
        $region26: #{multiplier_update.1} parent=15 // pred_check_branch
          %231 = sbr.rel (%p229) target = $region28
        $region27: #{multiplier_update.1} parent=15 // pred_region
          %s232 = sand.u32 %s22, 1
          %s233 = scalar_lea.sflag [#allocation7], %s232
          %s234 = sand.u32 %s98, 1
          %s235 = smul.addr %s234, 128
          %s236 = scalar_lea.vmem [#allocation8], %s235
          %s237 = smul.u32 16, %s29
          %s239 = ssub.s32 2048, 2048
          %240 = vsyncadd %s233, %s239
          %s241 = smul.addr %s237, 128
          %s242 = scalar_lea.hbm %s2, %s241
          %s243 = sshll.u32 %s236, 4
          %s244 = int_to_ptr.vmem [resolvable:$true] %s243
          %249 = dma.hbm_to_vmem [thread:$0]  %s242, 2048, %s244, %s233, 128, 128, 8
        $region28: #{multiplier_update.1} parent=15 // pred_fallthru
          _
        // Predicated region
        $region29: #{multiplier_update.1} parent=15 // pred_check
          %p250 = pneg %p134
        $region30: #{multiplier_update.1} parent=15 // pred_check_branch
          %252 = sbr.rel (%p250) target = $region32
        $region31: #{multiplier_update.1} parent=15 // pred_region
          %s253 = sand.u32 %s124, 1
          %s254 = scalar_lea.sflag [#allocation10], %s253
          %s255 = sand.u32 %s124, 1
          %s256 = smul.addr %s255, 128
          %s257 = scalar_lea.vmem [#allocation9], %s256
          %s258 = smul.u32 16, %s29
          %s260 = ssub.s32 2048, 2048
          %261 = vsyncadd %s254, %s260
          %s262 = smul.addr %s258, 128
          %s263 = scalar_lea.hbm %s3, %s262
          %s264 = sshll.u32 %s257, 4
          %s265 = int_to_ptr.vmem [resolvable:$true] %s264
          %270 = dma.hbm_to_vmem [thread:$0]  %s263, 2048, %s265, %s254, 128, 128, 8
        $region32: #{multiplier_update.1} parent=15 // pred_fallthru
          _
      $region16: #{multiplier_update.1} parent=5 // pred_fallthru
        _
      %p271 = scmp.le.s32.totalorder 1, %s22
      %p272 = scmp.lt.s32.totalorder %s22, 5
      %p273 = pnand %p271, %p272
      %p274 = pneg %p273
      // Predicated region
      $region33: #{multiplier_update.1} parent=5 // pred_check
        _
      $region34: #{multiplier_update.1} parent=5 // pred_check_branch
        %276 = sbr.rel (%p273) target = $region36
      $region35: #{multiplier_update.1} parent=5 // pred_region
        %s277 = ssub.s32 %s22, 1
        %s278 = sand.u32 %s49, 1
        %s279 = scalar_lea.sflag [#allocation4], %s278
        %s280 = sand.u32 %s49, 1
        %s281 = smul.addr %s280, 128
        %s282 = scalar_lea.vmem [#allocation3], %s281
        // Predicated region
        $region37: #{multiplier_update.1} parent=35 // pred_check
          %p283 = pneg %p62
        $region38: #{multiplier_update.1} parent=35 // pred_check_branch
          %285 = sbr.rel (%p283) target = $region40
        $region39: #{multiplier_update.1} parent=35 // pred_region
          %286 = dma.done %s279, 2048
        $region40: #{multiplier_update.1} parent=35 // pred_fallthru
          _
        %s287 = sand.u32 %s27, 1
        %s288 = scalar_lea.sflag [#allocation7], %s287
        %s289 = sand.u32 %s75, 1
        %s290 = smul.addr %s289, 128
        %s291 = scalar_lea.vmem [#allocation6], %s290
        // Predicated region
        $region41: #{multiplier_update.1} parent=35 // pred_check
          %p292 = pneg %p88
        $region42: #{multiplier_update.1} parent=35 // pred_check_branch
          %294 = sbr.rel (%p292) target = $region44
        $region43: #{multiplier_update.1} parent=35 // pred_region
          %295 = dma.done %s288, 2048
        $region44: #{multiplier_update.1} parent=35 // pred_fallthru
          _
        %s296 = sand.u32 %s27, 1
        %s297 = scalar_lea.sflag [#allocation7], %s296
        %s298 = sand.u32 %s101, 1
        %s299 = smul.addr %s298, 128
        %s300 = scalar_lea.vmem [#allocation8], %s299
        // Predicated region
        $region45: #{multiplier_update.1} parent=35 // pred_check
          %p301 = pneg %p114
        $region46: #{multiplier_update.1} parent=35 // pred_check_branch
          %303 = sbr.rel (%p301) target = $region48
        $region47: #{multiplier_update.1} parent=35 // pred_region
          %304 = dma.done %s297, 2048
        $region48: #{multiplier_update.1} parent=35 // pred_fallthru
          _
        %s305 = sand.u32 %s127, 1
        %s306 = scalar_lea.sflag [#allocation10], %s305
        %s307 = sand.u32 %s127, 1
        %s308 = smul.addr %s307, 128
        %s309 = scalar_lea.vmem [#allocation9], %s308
        // Predicated region
        $region49: #{multiplier_update.1} parent=35 // pred_check
          %p310 = pneg %p140
        $region50: #{multiplier_update.1} parent=35 // pred_check_branch
          %312 = sbr.rel (%p310) target = $region52
        $region51: #{multiplier_update.1} parent=35 // pred_region
          %313 = dma.done %s306, 2048
        $region52: #{multiplier_update.1} parent=35 // pred_fallthru
          _
        %s314 = sand.u32 %s49, 1
        %s315 = scalar_lea.sflag [#allocation4], %s314
        %s316 = sand.u32 %s49, 1
        %s317 = smul.addr %s316, 128
        %s318 = scalar_lea.vmem [#allocation3], %s317
        %p319 = pneg %p62
        %p320 = pneg %p59
        %s321 = sand.u32 %s27, 1
        %s322 = scalar_lea.sflag [#allocation7], %s321
        %s323 = sand.u32 %s75, 1
        %s324 = smul.addr %s323, 128
        %s325 = scalar_lea.vmem [#allocation6], %s324
        %p326 = pneg %p88
        %p327 = pneg %p85
        %s328 = sand.u32 %s27, 1
        %s329 = scalar_lea.sflag [#allocation7], %s328
        %s330 = sand.u32 %s101, 1
        %s331 = smul.addr %s330, 128
        %s332 = scalar_lea.vmem [#allocation8], %s331
        %p333 = pneg %p114
        %p334 = pneg %p111
        %s335 = sand.u32 %s127, 1
        %s336 = scalar_lea.sflag [#allocation10], %s335
        %s337 = sand.u32 %s127, 1
        %s338 = smul.addr %s337, 128
        %s339 = scalar_lea.vmem [#allocation9], %s338
        %p340 = pneg %p140
        %p341 = pneg %p137
        %p342 = pneg %p166
        %p343 = pneg %p163
        %s344 = sand.u32 %s153, 1
        %s345 = scalar_lea.sflag [#allocation5], %s344
        %s346 = sand.u32 %s153, 1
        %s347 = smul.addr %s346, 128
        %s348 = scalar_lea.vmem [#allocation11], %s347
        %s349 = smul.u32 16, %s31
        %s350 = smul.u32 16, %s32
        %s351 = smul.u32 16, %s31
        %s352 = smul.u32 16, %s31
        %s353 = smul.u32 16, %s31
        %p354 = scmp.eq.s32.totalorder %s32, 0
        // Predicated region
        $region53: #{multiplier_update.1} parent=35 // pred_check
          %p355 = pneg %p354
        $region54: #{multiplier_update.1} parent=35 // pred_check_branch
          %357 = sbr.rel (%p355) target = $region56
        $region55: #{multiplier_update.1} parent=35 // pred_region
          %358 = vst [vmem:[#allocation2] sm:$0xff] 0.0
          %359 = vst [vmem:[#allocation2 + $0x8] sm:$0xff] 0.0
          %360 = vst [vmem:[#allocation2 + $0x10] sm:$0xff] 0.0
          %361 = vst [vmem:[#allocation2 + $0x18] sm:$0xff] 0.0
          %362 = vst [vmem:[#allocation2 + $0x20] sm:$0xff] 0.0
          %363 = vst [vmem:[#allocation2 + $0x28] sm:$0xff] 0.0
          %364 = vst [vmem:[#allocation2 + $0x30] sm:$0xff] 0.0
          %365 = vst [vmem:[#allocation2 + $0x38] sm:$0xff] 0.0
          %366 = vst [vmem:[#allocation2 + $0x40] sm:$0xff] 0.0
          %367 = vst [vmem:[#allocation2 + $0x48] sm:$0xff] 0.0
          %368 = vst [vmem:[#allocation2 + $0x50] sm:$0xff] 0.0
          %369 = vst [vmem:[#allocation2 + $0x58] sm:$0xff] 0.0
          %370 = vst [vmem:[#allocation2 + $0x60] sm:$0xff] 0.0
          %371 = vst [vmem:[#allocation2 + $0x68] sm:$0xff] 0.0
          %372 = vst [vmem:[#allocation2 + $0x70] sm:$0xff] 0.0
          %373 = vst [vmem:[#allocation2 + $0x78] sm:$0xff] 0.0
        $region56: #{multiplier_update.1} parent=35 // pred_fallthru
          _
        %v374 = vld [vmem:[#allocation2] sm:$0xff]
        %v375 = vld [vmem:[#allocation2 + $0x8] sm:$0xff]
        %v376 = vld [vmem:[#allocation2 + $0x10] sm:$0xff]
        %v377 = vld [vmem:[#allocation2 + $0x18] sm:$0xff]
        %v378 = vld [vmem:[#allocation2 + $0x20] sm:$0xff]
        %v379 = vld [vmem:[#allocation2 + $0x28] sm:$0xff]
        %v380 = vld [vmem:[#allocation2 + $0x30] sm:$0xff]
        %v381 = vld [vmem:[#allocation2 + $0x38] sm:$0xff]
        %v382 = vld [vmem:[#allocation2 + $0x40] sm:$0xff]
        %v383 = vld [vmem:[#allocation2 + $0x48] sm:$0xff]
        %v384 = vld [vmem:[#allocation2 + $0x50] sm:$0xff]
        %v385 = vld [vmem:[#allocation2 + $0x58] sm:$0xff]
        %v386 = vld [vmem:[#allocation2 + $0x60] sm:$0xff]
        %v387 = vld [vmem:[#allocation2 + $0x68] sm:$0xff]
        %v388 = vld [vmem:[#allocation2 + $0x70] sm:$0xff]
        %v389 = vld [vmem:[#allocation2 + $0x78] sm:$0xff]
        %v390 = vld [vmem:[%s282] sm:$0xff]
        %v391 = vld [vmem:[%s282 + $0x8] sm:$0xff]
        %v392 = vld [vmem:[%s282 + $0x10] sm:$0xff]
        %v393 = vld [vmem:[%s282 + $0x18] sm:$0xff]
        %v394 = vld [vmem:[%s282 + $0x20] sm:$0xff]
        %v395 = vld [vmem:[%s282 + $0x28] sm:$0xff]
        %v396 = vld [vmem:[%s282 + $0x30] sm:$0xff]
        %v397 = vld [vmem:[%s282 + $0x38] sm:$0xff]
        %v398 = vld [vmem:[%s282 + $0x40] sm:$0xff]
        %v399 = vld [vmem:[%s282 + $0x48] sm:$0xff]
        %v400 = vld [vmem:[%s282 + $0x50] sm:$0xff]
        %v401 = vld [vmem:[%s282 + $0x58] sm:$0xff]
        %v402 = vld [vmem:[%s282 + $0x60] sm:$0xff]
        %v403 = vld [vmem:[%s282 + $0x68] sm:$0xff]
        %v404 = vld [vmem:[%s282 + $0x70] sm:$0xff]
        %v405 = vld [vmem:[%s282 + $0x78] sm:$0xff]
        %v406 = vld [vmem:[%s291] sm:$0xff]
        %v407 = vld [vmem:[%s291 + $0x8] sm:$0xff]
        %v408 = vld [vmem:[%s291 + $0x10] sm:$0xff]
        %v409 = vld [vmem:[%s291 + $0x18] sm:$0xff]
        %v410 = vld [vmem:[%s291 + $0x20] sm:$0xff]
        %v411 = vld [vmem:[%s291 + $0x28] sm:$0xff]
        %v412 = vld [vmem:[%s291 + $0x30] sm:$0xff]
        %v413 = vld [vmem:[%s291 + $0x38] sm:$0xff]
        %v414 = vld [vmem:[%s291 + $0x40] sm:$0xff]
        %v415 = vld [vmem:[%s291 + $0x48] sm:$0xff]
        %v416 = vld [vmem:[%s291 + $0x50] sm:$0xff]
        %v417 = vld [vmem:[%s291 + $0x58] sm:$0xff]
        %v418 = vld [vmem:[%s291 + $0x60] sm:$0xff]
        %v419 = vld [vmem:[%s291 + $0x68] sm:$0xff]
        %v420 = vld [vmem:[%s291 + $0x70] sm:$0xff]
        %v421 = vld [vmem:[%s291 + $0x78] sm:$0xff]
        %422 = vmatprep.subr.mxu0 0.0
        %423 = vmatpush1.msra.mxu0 %v406
        %424 = vmatprep.subr.mxu0 0.0
        %425 = vmatpush1.msra.mxu0 %v407
        %426 = vmatprep.subr.mxu0 0.0
        %427 = vmatpush1.msra.mxu0 %v408
        %428 = vmatprep.subr.mxu0 0.0
        %429 = vmatpush1.msra.mxu0 %v409
        %430 = vmatprep.subr.mxu0 0.0
        %431 = vmatpush1.msra.mxu0 %v410
        %432 = vmatprep.subr.mxu0 0.0
        %433 = vmatpush1.msra.mxu0 %v411
        %434 = vmatprep.subr.mxu0 0.0
        %435 = vmatpush1.msra.mxu0 %v412
        %436 = vmatprep.subr.mxu0 0.0
        %437 = vmatpush1.msra.mxu0 %v413
        %438 = vmatprep.subr.mxu0 0.0
        %439 = vmatpush1.msra.mxu0 %v414
        %440 = vmatprep.subr.mxu0 0.0
        %441 = vmatpush1.msra.mxu0 %v415
        %442 = vmatprep.subr.mxu0 0.0
        %443 = vmatpush1.msra.mxu0 %v416
        %444 = vmatprep.subr.mxu0 0.0
        %445 = vmatpush1.msra.mxu0 %v417
        %446 = vmatprep.subr.mxu0 0.0
        %447 = vmatpush1.msra.mxu0 %v418
        %448 = vmatprep.subr.mxu0 0.0
        %449 = vmatpush1.msra.mxu0 %v419
        %450 = vmatprep.subr.mxu0 0.0
        %451 = vmatpush1.msra.mxu0 %v420
        %452 = vmatprep.subr.mxu0 0.0
        %453 = vmatpush1.msra.mxu0 %v421
        %454 = vmatprep.subr.mxu0 0.0
        %455 = vmatpush1.msra.mxu0 0.0
        %456 = vmatprep.subr.mxu0 0.0
        %457 = vmatpush1.msra.mxu0 0.0
        %458 = vmatprep.subr.mxu0 0.0
        %459 = vmatpush1.msra.mxu0 0.0
        %460 = vmatprep.subr.mxu0 0.0
        %461 = vmatpush1.msra.mxu0 0.0
        %462 = vmatprep.subr.mxu0 0.0
        %463 = vmatpush1.msra.mxu0 0.0
        %464 = vmatprep.subr.mxu0 0.0
        %465 = vmatpush1.msra.mxu0 0.0
        %466 = vmatprep.subr.mxu0 0.0
        %467 = vmatpush1.msra.mxu0 0.0
        %468 = vmatprep.subr.mxu0 0.0
        %469 = vmatpush1.msra.mxu0 0.0
        %470 = vmatprep.subr.mxu0 0.0
        %471 = vmatpush1.msra.mxu0 0.0
        %472 = vmatprep.subr.mxu0 0.0
        %473 = vmatpush1.msra.mxu0 0.0
        %474 = vmatprep.subr.mxu0 0.0
        %475 = vmatpush1.msra.mxu0 0.0
        %476 = vmatprep.subr.mxu0 0.0
        %477 = vmatpush1.msra.mxu0 0.0
        %478 = vmatprep.subr.mxu0 0.0
        %479 = vmatpush1.msra.mxu0 0.0
        %480 = vmatprep.subr.mxu0 0.0
        %481 = vmatpush1.msra.mxu0 0.0
        %482 = vmatprep.subr.mxu0 0.0
        %483 = vmatpush1.msra.mxu0 0.0
        %484 = vmatprep.subr.mxu0 0.0
        %485 = vmatpush1.msra.mxu0 0.0
        %486 = vmatprep.mubr.f32.mxu0 0.0
        %487 = vmatmul.mubr.f32.gmra.mrb[0].mxu0 %v390
        %v488 = vpop.f32.mrb[0].mxu0
        %v489 = vadd.f32 0.0, %v488
        %v490 = vpop.f32.mrb[0].mxu0
        %491 = vmatprep.mubr.f32.mxu0 0.0
        %492 = vmatmul.mubr.f32.gmra.mrb[0].mxu0 %v391
        %v493 = vpop.f32.mrb[0].mxu0
        %v494 = vadd.f32 0.0, %v493
        %v495 = vpop.f32.mrb[0].mxu0
        %496 = vmatprep.mubr.f32.mxu0 0.0
        %497 = vmatmul.mubr.f32.gmra.mrb[0].mxu0 %v392
        %v498 = vpop.f32.mrb[0].mxu0
        %v499 = vadd.f32 0.0, %v498
        %v500 = vpop.f32.mrb[0].mxu0
        %501 = vmatprep.mubr.f32.mxu0 0.0
        %502 = vmatmul.mubr.f32.gmra.mrb[0].mxu0 %v393
        %v503 = vpop.f32.mrb[0].mxu0
        %v504 = vadd.f32 0.0, %v503
        %v505 = vpop.f32.mrb[0].mxu0
        %506 = vmatprep.mubr.f32.mxu0 0.0
        %507 = vmatmul.mubr.f32.gmra.mrb[0].mxu0 %v394
        %v508 = vpop.f32.mrb[0].mxu0
        %v509 = vadd.f32 0.0, %v508
        %v510 = vpop.f32.mrb[0].mxu0
        %511 = vmatprep.mubr.f32.mxu0 0.0
        %512 = vmatmul.mubr.f32.gmra.mrb[0].mxu0 %v395
        %v513 = vpop.f32.mrb[0].mxu0
        %v514 = vadd.f32 0.0, %v513
        %v515 = vpop.f32.mrb[0].mxu0
        %516 = vmatprep.mubr.f32.mxu0 0.0
        %517 = vmatmul.mubr.f32.gmra.mrb[0].mxu0 %v396
        %v518 = vpop.f32.mrb[0].mxu0
        %v519 = vadd.f32 0.0, %v518
        %v520 = vpop.f32.mrb[0].mxu0
        %521 = vmatprep.mubr.f32.mxu0 0.0
        %522 = vmatmul.mubr.f32.gmra.mrb[0].mxu0 %v397
        %v523 = vpop.f32.mrb[0].mxu0
        %v524 = vadd.f32 0.0, %v523
        %v525 = vpop.f32.mrb[0].mxu0
        %526 = vmatprep.mubr.f32.mxu0 0.0
        %527 = vmatmul.mubr.f32.gmra.mrb[0].mxu0 %v398
        %v528 = vpop.f32.mrb[0].mxu0
        %v529 = vadd.f32 0.0, %v528
        %v530 = vpop.f32.mrb[0].mxu0
        %531 = vmatprep.mubr.f32.mxu0 0.0
        %532 = vmatmul.mubr.f32.gmra.mrb[0].mxu0 %v399
        %v533 = vpop.f32.mrb[0].mxu0
        %v534 = vadd.f32 0.0, %v533
        %v535 = vpop.f32.mrb[0].mxu0
        %536 = vmatprep.mubr.f32.mxu0 0.0
        %537 = vmatmul.mubr.f32.gmra.mrb[0].mxu0 %v400
        %v538 = vpop.f32.mrb[0].mxu0
        %v539 = vadd.f32 0.0, %v538
        %v540 = vpop.f32.mrb[0].mxu0
        %541 = vmatprep.mubr.f32.mxu0 0.0
        %542 = vmatmul.mubr.f32.gmra.mrb[0].mxu0 %v401
        %v543 = vpop.f32.mrb[0].mxu0
        %v544 = vadd.f32 0.0, %v543
        %v545 = vpop.f32.mrb[0].mxu0
        %546 = vmatprep.mubr.f32.mxu0 0.0
        %547 = vmatmul.mubr.f32.gmra.mrb[0].mxu0 %v402
        %v548 = vpop.f32.mrb[0].mxu0
        %v549 = vadd.f32 0.0, %v548
        %v550 = vpop.f32.mrb[0].mxu0
        %551 = vmatprep.mubr.f32.mxu0 0.0
        %552 = vmatmul.mubr.f32.gmra.mrb[0].mxu0 %v403
        %v553 = vpop.f32.mrb[0].mxu0
        %v554 = vadd.f32 0.0, %v553
        %v555 = vpop.f32.mrb[0].mxu0
        %556 = vmatprep.mubr.f32.mxu0 0.0
        %557 = vmatmul.mubr.f32.gmra.mrb[0].mxu0 %v404
        %v558 = vpop.f32.mrb[0].mxu0
        %v559 = vadd.f32 0.0, %v558
        %v560 = vpop.f32.mrb[0].mxu0
        %561 = vmatprep.mubr.f32.mxu0 0.0
        %562 = vmatmul.mubr.f32.gmra.mrb[0].mxu0 %v405
        %v563 = vpop.f32.mrb[0].mxu0
        %v564 = vadd.f32 0.0, %v563
        %v565 = vpop.f32.mrb[0].mxu0
        %566 = vdwg.mxu0
        %v567 = vadd.f32 %v374, %v489
        %v568 = vadd.f32 %v375, %v494
        %v569 = vadd.f32 %v376, %v499
        %v570 = vadd.f32 %v377, %v504
        %v571 = vadd.f32 %v378, %v509
        %v572 = vadd.f32 %v379, %v514
        %v573 = vadd.f32 %v380, %v519
        %v574 = vadd.f32 %v381, %v524
        %v575 = vadd.f32 %v382, %v529
        %v576 = vadd.f32 %v383, %v534
        %v577 = vadd.f32 %v384, %v539
        %v578 = vadd.f32 %v385, %v544
        %v579 = vadd.f32 %v386, %v549
        %v580 = vadd.f32 %v387, %v554
        %v581 = vadd.f32 %v388, %v559
        %v582 = vadd.f32 %v389, %v564
        %583 = vst [vmem:[#allocation2] sm:$0xff] %v567
        %584 = vst [vmem:[#allocation2 + $0x8] sm:$0xff] %v568
        %585 = vst [vmem:[#allocation2 + $0x10] sm:$0xff] %v569
        %586 = vst [vmem:[#allocation2 + $0x18] sm:$0xff] %v570
        %587 = vst [vmem:[#allocation2 + $0x20] sm:$0xff] %v571
        %588 = vst [vmem:[#allocation2 + $0x28] sm:$0xff] %v572
        %589 = vst [vmem:[#allocation2 + $0x30] sm:$0xff] %v573
        %590 = vst [vmem:[#allocation2 + $0x38] sm:$0xff] %v574
        %591 = vst [vmem:[#allocation2 + $0x40] sm:$0xff] %v575
        %592 = vst [vmem:[#allocation2 + $0x48] sm:$0xff] %v576
        %593 = vst [vmem:[#allocation2 + $0x50] sm:$0xff] %v577
        %594 = vst [vmem:[#allocation2 + $0x58] sm:$0xff] %v578
        %595 = vst [vmem:[#allocation2 + $0x60] sm:$0xff] %v579
        %596 = vst [vmem:[#allocation2 + $0x68] sm:$0xff] %v580
        %597 = vst [vmem:[#allocation2 + $0x70] sm:$0xff] %v581
        %598 = vst [vmem:[#allocation2 + $0x78] sm:$0xff] %v582
        %p599 = scmp.eq.s32.totalorder %s32, 1
        // Predicated region
        $region57: #{multiplier_update.1} parent=35 // pred_check
          %p600 = pneg %p599
        $region58: #{multiplier_update.1} parent=35 // pred_check_branch
          %602 = sbr.rel (%p600) target = $region60
        $region59: #{multiplier_update.1} parent=35 // pred_region
          %v603 = vld [vmem:[%s309] sm:$0xff]
          %v604 = vld [vmem:[%s309 + $0x8] sm:$0xff]
          %v605 = vld [vmem:[%s309 + $0x10] sm:$0xff]
          %v606 = vld [vmem:[%s309 + $0x18] sm:$0xff]
          %v607 = vld [vmem:[%s309 + $0x20] sm:$0xff]
          %v608 = vld [vmem:[%s309 + $0x28] sm:$0xff]
          %v609 = vld [vmem:[%s309 + $0x30] sm:$0xff]
          %v610 = vld [vmem:[%s309 + $0x38] sm:$0xff]
          %v611 = vld [vmem:[%s309 + $0x40] sm:$0xff]
          %v612 = vld [vmem:[%s309 + $0x48] sm:$0xff]
          %v613 = vld [vmem:[%s309 + $0x50] sm:$0xff]
          %v614 = vld [vmem:[%s309 + $0x58] sm:$0xff]
          %v615 = vld [vmem:[%s309 + $0x60] sm:$0xff]
          %v616 = vld [vmem:[%s309 + $0x68] sm:$0xff]
          %v617 = vld [vmem:[%s309 + $0x70] sm:$0xff]
          %v618 = vld [vmem:[%s309 + $0x78] sm:$0xff]
          %v619 = vld [vmem:[#allocation2] sm:$0xff]
          %v620 = vld [vmem:[#allocation2 + $0x8] sm:$0xff]
          %v621 = vld [vmem:[#allocation2 + $0x10] sm:$0xff]
          %v622 = vld [vmem:[#allocation2 + $0x18] sm:$0xff]
          %v623 = vld [vmem:[#allocation2 + $0x20] sm:$0xff]
          %v624 = vld [vmem:[#allocation2 + $0x28] sm:$0xff]
          %v625 = vld [vmem:[#allocation2 + $0x30] sm:$0xff]
          %v626 = vld [vmem:[#allocation2 + $0x38] sm:$0xff]
          %v627 = vld [vmem:[#allocation2 + $0x40] sm:$0xff]
          %v628 = vld [vmem:[#allocation2 + $0x48] sm:$0xff]
          %v629 = vld [vmem:[#allocation2 + $0x50] sm:$0xff]
          %v630 = vld [vmem:[#allocation2 + $0x58] sm:$0xff]
          %v631 = vld [vmem:[#allocation2 + $0x60] sm:$0xff]
          %v632 = vld [vmem:[#allocation2 + $0x68] sm:$0xff]
          %v633 = vld [vmem:[#allocation2 + $0x70] sm:$0xff]
          %v634 = vld [vmem:[#allocation2 + $0x78] sm:$0xff]
          %v635 = vld [vmem:[%s300] sm:$0xff]
          %v636 = vld [vmem:[%s300 + $0x8] sm:$0xff]
          %v637 = vld [vmem:[%s300 + $0x10] sm:$0xff]
          %v638 = vld [vmem:[%s300 + $0x18] sm:$0xff]
          %v639 = vld [vmem:[%s300 + $0x20] sm:$0xff]
          %v640 = vld [vmem:[%s300 + $0x28] sm:$0xff]
          %v641 = vld [vmem:[%s300 + $0x30] sm:$0xff]
          %v642 = vld [vmem:[%s300 + $0x38] sm:$0xff]
          %v643 = vld [vmem:[%s300 + $0x40] sm:$0xff]
          %v644 = vld [vmem:[%s300 + $0x48] sm:$0xff]
          %v645 = vld [vmem:[%s300 + $0x50] sm:$0xff]
          %v646 = vld [vmem:[%s300 + $0x58] sm:$0xff]
          %v647 = vld [vmem:[%s300 + $0x60] sm:$0xff]
          %v648 = vld [vmem:[%s300 + $0x68] sm:$0xff]
          %v649 = vld [vmem:[%s300 + $0x70] sm:$0xff]
          %v650 = vld [vmem:[%s300 + $0x78] sm:$0xff]
          %v651 = vsub.f32 %v619, %v635
          %v652 = vsub.f32 %v620, %v636
          %v653 = vsub.f32 %v621, %v637
          %v654 = vsub.f32 %v622, %v638
          %v655 = vsub.f32 %v623, %v639
          %v656 = vsub.f32 %v624, %v640
          %v657 = vsub.f32 %v625, %v641
          %v658 = vsub.f32 %v626, %v642
          %v659 = vsub.f32 %v627, %v643
          %v660 = vsub.f32 %v628, %v644
          %v661 = vsub.f32 %v629, %v645
          %v662 = vsub.f32 %v630, %v646
          %v663 = vsub.f32 %v631, %v647
          %v664 = vsub.f32 %v632, %v648
          %v665 = vsub.f32 %v633, %v649
          %v666 = vsub.f32 %v634, %v650
          %v667 = vmul.f32 %v651, 0.5
          %v668 = vmul.f32 %v652, 0.5
          %v669 = vmul.f32 %v653, 0.5
          %v670 = vmul.f32 %v654, 0.5
          %v671 = vmul.f32 %v655, 0.5
          %v672 = vmul.f32 %v656, 0.5
          %v673 = vmul.f32 %v657, 0.5
          %v674 = vmul.f32 %v658, 0.5
          %v675 = vmul.f32 %v659, 0.5
          %v676 = vmul.f32 %v660, 0.5
          %v677 = vmul.f32 %v661, 0.5
          %v678 = vmul.f32 %v662, 0.5
          %v679 = vmul.f32 %v663, 0.5
          %v680 = vmul.f32 %v664, 0.5
          %v681 = vmul.f32 %v665, 0.5
          %v682 = vmul.f32 %v666, 0.5
          %v683 = vadd.f32 %v603, %v667
          %v684 = vadd.f32 %v604, %v668
          %v685 = vadd.f32 %v605, %v669
          %v686 = vadd.f32 %v606, %v670
          %v687 = vadd.f32 %v607, %v671
          %v688 = vadd.f32 %v608, %v672
          %v689 = vadd.f32 %v609, %v673
          %v690 = vadd.f32 %v610, %v674
          %v691 = vadd.f32 %v611, %v675
          %v692 = vadd.f32 %v612, %v676
          %v693 = vadd.f32 %v613, %v677
          %v694 = vadd.f32 %v614, %v678
          %v695 = vadd.f32 %v615, %v679
          %v696 = vadd.f32 %v616, %v680
          %v697 = vadd.f32 %v617, %v681
          %v698 = vadd.f32 %v618, %v682
          %699 = vst [vmem:[%s348] sm:$0xff] %v683
          %700 = vst [vmem:[%s348 + $0x8] sm:$0xff] %v684
          %701 = vst [vmem:[%s348 + $0x10] sm:$0xff] %v685
          %702 = vst [vmem:[%s348 + $0x18] sm:$0xff] %v686
          %703 = vst [vmem:[%s348 + $0x20] sm:$0xff] %v687
          %704 = vst [vmem:[%s348 + $0x28] sm:$0xff] %v688
          %705 = vst [vmem:[%s348 + $0x30] sm:$0xff] %v689
          %706 = vst [vmem:[%s348 + $0x38] sm:$0xff] %v690
          %707 = vst [vmem:[%s348 + $0x40] sm:$0xff] %v691
          %708 = vst [vmem:[%s348 + $0x48] sm:$0xff] %v692
          %709 = vst [vmem:[%s348 + $0x50] sm:$0xff] %v693
          %710 = vst [vmem:[%s348 + $0x58] sm:$0xff] %v694
          %711 = vst [vmem:[%s348 + $0x60] sm:$0xff] %v695
          %712 = vst [vmem:[%s348 + $0x68] sm:$0xff] %v696
          %713 = vst [vmem:[%s348 + $0x70] sm:$0xff] %v697
          %714 = vst [vmem:[%s348 + $0x78] sm:$0xff] %v698
        $region60: #{multiplier_update.1} parent=35 // pred_fallthru
          _
        %s715 = sand.u32 %s153, 1
        %s716 = scalar_lea.sflag [#allocation5], %s715
        %s717 = sand.u32 %s153, 1
        %s718 = smul.addr %s717, 128
        %s719 = scalar_lea.vmem [#allocation11], %s718
        // Predicated region
        $region61: #{multiplier_update.1} parent=35 // pred_check
          %p720 = pneg %p163
        $region62: #{multiplier_update.1} parent=35 // pred_check_branch
          %722 = sbr.rel (%p720) target = $region64
        $region63: #{multiplier_update.1} parent=35 // pred_region
          %s723 = smul.u32 16, %s31
          %s725 = ssub.s32 2048, 2048
          %726 = vsyncadd %s716, %s725
          %s727 = smul.addr %s723, 128
          %s728 = scalar_lea.hbm %s4, %s727
          %s729 = sshll.u32 %s719, 4
          %s730 = int_to_ptr.vmem [resolvable:$true] %s729
          %735 = dma.vmem_to_hbm [thread:$0]  %s730, 2048, %s728, %s716, 128, 128, 8
        $region64: #{multiplier_update.1} parent=35 // pred_fallthru
          _
      $region36: #{multiplier_update.1} parent=5 // pred_fallthru
        _
      %p736 = scmp.le.s32.totalorder 2, %s22
      // Predicated region
      $region65: #{multiplier_update.1} parent=5 // pred_check
        %p737 = pneg %p736
      $region66: #{multiplier_update.1} parent=5 // pred_check_branch
        %739 = sbr.rel (%p737) target = $region68
      $region67: #{multiplier_update.1} parent=5 // pred_region
        %s740 = ssub.s32 %s22, 2
        // Predicated region
        $region69: #{multiplier_update.1} parent=67 // pred_check
          %p741 = pneg %p169
        $region70: #{multiplier_update.1} parent=67 // pred_check_branch
          %743 = sbr.rel (%p741) target = $region72
        $region71: #{multiplier_update.1} parent=67 // pred_region
          %s744 = sand.u32 %s154, 1
          %s745 = scalar_lea.sflag [#allocation5], %s744
          %s746 = sand.u32 %s154, 1
          %s747 = smul.addr %s746, 128
          %s748 = scalar_lea.vmem [#allocation11], %s747
          %749 = dma.done %s745, 2048
        $region72: #{multiplier_update.1} parent=67 // pred_fallthru
          _
      $region68: #{multiplier_update.1} parent=5 // pred_fallthru
        _
    $region6: #{multiplier_update.1} parent=1 // loop_footer
      %s26 = sadd.s32 1, %s22
    $region7: #{multiplier_update.1} parent=1 // loop_footer_branch
      %21 = sbr.rel target = $region3
    $region8: #{multiplier_update.1} parent=1 // loop_exit
      _
    %750 = vsyncpa [#allocation4], 1
    %s751 = scalar_lea.sflag [#allocation4], 1
    %752 = vsyncpa %s751, 1
    %753 = vsyncpa [#allocation7], 1
    %s754 = scalar_lea.sflag [#allocation7], 1
    %755 = vsyncpa %s754, 1
    %756 = vsyncpa [#allocation10], 1
    %s757 = scalar_lea.sflag [#allocation10], 1
    %758 = vsyncpa %s757, 1
    %759 = vsyncpa [#allocation5], 1
    %s760 = scalar_lea.sflag [#allocation5], 1
    %761 = vsyncpa %s760, 1

</llo_original>
